<compile_context>
chip_gen: v6e
topology: v6e:2x2x1
jax: 0.10.0
libtpu: 0.0.40
codegen_flags: <defaults>
</compile_context>

<pallas_src>
import functools

import jax
import jax.numpy as jnp
from jax.experimental import pallas as pl
from jax.experimental.pallas import tpu as pltpu


def _vmem_limit():
    """Per-generation scoped-VMEM limit (v5e/v6e: up to 96 MiB, v7x: ~48 MiB)."""
    try:
        cap = pltpu.get_tpu_info().vmem_capacity_bytes
        return min(96 * 1024 * 1024, int(cap) * 3 // 4)
    except Exception:  # pragma: no cover - conservative fallback
        return 32 * 1024 * 1024


# ---------------------------------------------------------------------------
# Kernel 1: attention gate.
#   scores = [w_att ; w_pick] @ x            (2, TN)  -- one MXU dot
#   x_att  = sigmoid(scores[0])              (bn, 1, N)  f32 (for top-k)
#   x_nc   = (x * x_att) channels-last       (bn, N, C)  bf16 (walk slab)
#   xw     = (w_pick . x) * x_att            (bn, 1, N)  f32 (slab score col)
# ---------------------------------------------------------------------------
def _att_kernel(x_ref, w2_ref, att_ref, xnc_ref, xw_ref):
    x = x_ref[0]                                                      # (C, TN)
    s = jnp.dot(w2_ref[...], x, preferred_element_type=jnp.float32)   # (2, TN)
    att = jax.nn.sigmoid(s[0:1, :])                                   # (1, TN)
    gated = x * att                                                   # (C, TN)
    att_ref[0] = att.astype(att_ref.dtype)
    xw_ref[0] = (s[1:2, :] * att).astype(xw_ref.dtype)
    xnc_ref[0] = jnp.transpose(gated, (1, 0)).astype(xnc_ref.dtype)   # (TN, C)


def attention_gate(x, w2):
    bn, c, n = x.shape
    # Tile N when large so both v7x TensorCores get work even at bn == 1.
    tn = n if (n % 1024) else 1024
    return pl.pallas_call(
        _att_kernel,
        grid=(bn, n // tn),
        in_specs=[pl.BlockSpec((1, c, tn), lambda b, t: (b, 0, t)),
                  pl.BlockSpec((2, c), lambda b, t: (0, 0))],
        out_specs=[pl.BlockSpec((1, 1, tn), lambda b, t: (b, 0, t)),
                   pl.BlockSpec((1, tn, c), lambda b, t: (b, t, 0)),
                   pl.BlockSpec((1, 1, tn), lambda b, t: (b, 0, t))],
        out_shape=(jax.ShapeDtypeStruct((bn, 1, n), x.dtype),
                   jax.ShapeDtypeStruct((bn, n, c), jnp.bfloat16),
                   jax.ShapeDtypeStruct((bn, 1, n), x.dtype)),
        compiler_params=pltpu.CompilerParams(
            dimension_semantics=("parallel", "parallel"),
            vmem_limit_bytes=_vmem_limit()),
    )(x, w2)


# ---------------------------------------------------------------------------
# Kernel 2: the fused walk.  grid = (bn, curve_length), step axis "arbitrary".
# Slab (N, CS) bf16 stays VMEM-resident per batch element; walk state
# (gathered row of the current point, momentum feature) lives in VMEM scratch;
# the per-step output slice is written into a step-resident output block.
#
# Slab column layout: [0:C) gated features | [C:C+k) adj_hi | [C+k:C+2k) adj_lo
#                     | [C+2k] per-point agent "pick" score.
# ---------------------------------------------------------------------------
def _walk_kernel(start_ref, slab_ref, dwc_ref, dwp_ref, wpr_ref, s_ref, t_ref,
                 bias_ref, out_ref, cur_g, pre, *, npts, nchan, ncur, knbr):
    step = pl.program_id(1)
    m, c, k = ncur, nchan, knbr
    slab = slab_ref[0]                                                # (N, CS) bf16
    iota_n = jax.lax.broadcasted_iota(jnp.float32, (1, npts), 1)      # (1, N)

    def gather(idx_col):
        """Rows of the slab selected by a column of (exact f32 int) indices."""
        oh = (idx_col == iota_n).astype(jnp.float32).astype(jnp.bfloat16)
        return jnp.dot(oh, slab, preferred_element_type=jnp.float32)

    # ---- step 0: initialise the walk state from the starting indices ------
    @pl.when(step == 0)
    def _():
        g0 = gather(start_ref[0])                                     # (M, CS)
        cur_g[...] = g0
        pre[...] = g0[:, :c]

    g = cur_g[...]                                                    # (M, CS)
    cur_v = g[:, :c]                                                  # (M, C)
    adj_hi = g[:, c:c + k]                                            # (M, k)
    adj_lo = g[:, c + k:c + 2 * k]                                    # (M, k)

    # ---- momentum update of `pre` (steps > 0) ------------------------------
    @pl.when(step > 0)
    def _():
        # softmax over the 2 conv channels == sigmoid of the score difference
        diff = (jnp.sum(cur_v * dwc_ref[...], axis=-1, keepdims=True)
                + jnp.sum(pre[...] * dwp_ref[...], axis=-1, keepdims=True)
                + bias_ref[0, 1])                                     # (M, 1)
        p = jax.nn.sigmoid(diff)
        # PyTorch (bn,2,M).view(bn,1,M,2) scramble via one stacked matmul.
        w = jnp.dot(s_ref[...], p, preferred_element_type=jnp.float32) + t_ref[...]
        pre[...] = cur_v * w[:m] + pre[...] * w[m:]

    pre_v = pre[...]
    cd = cur_v - pre_v                                                # (M, C)
    n1sq = jnp.sum(cd * cd, axis=-1, keepdims=True)                   # (M, 1)
    pre_score = (jnp.sum(pre_v * wpr_ref[...], axis=-1, keepdims=True)
                 + bias_ref[0, 0])                                    # (M, 1)

    # Adjacency rows of the current points (exact: hi/lo < 256 are bf16-exact).
    pick_mk = jnp.floor(adj_hi + 0.5) * 256.0 + jnp.floor(adj_lo + 0.5)  # (M, k)

    # ---- ONE wide gather of all M*k candidate neighbours -------------------
    # Flat row order is j-major (row r = j*M + i), so per-curve quantities are
    # plain k-fold sublane tiles and flat->(M,k) folds are static slices.
    pick_flat = jnp.concatenate([pick_mk[:, j:j + 1] for j in range(k)], axis=0)
    pks = gather(pick_flat)                                           # (M*k, CS)

    cur_rep = jnp.concatenate([cur_v] * k, axis=0)                    # (M*k, C)
    cd_rep = jnp.concatenate([cd] * k, axis=0)                        # (M*k, C)
    ps_rep = jnp.concatenate([pre_score] * k, axis=0)                 # (M*k, 1)

    nd = pks[:, :c] - cur_rep
    dots_f = jnp.sum(nd * cd_rep, axis=-1, keepdims=True)             # (M*k, 1)
    n2sq_f = jnp.sum(nd * nd, axis=-1, keepdims=True)                 # (M*k, 1)
    score_f = pks[:, c + 2 * k:c + 2 * k + 1] + ps_rep                # (M*k, 1)

    def fold(v):  # (M*k, 1) j-major -> (M, k)
        return jnp.concatenate([v[j * m:(j + 1) * m, :] for j in range(k)],
                               axis=1)

    dots = fold(dots_f)
    n2sq = fold(n2sq_f)
    score = fold(score_f)

    # Crossover suppression (exact no-op at step 0 since cd == 0 there);
    # rsqrt on squared norms replaces 2x sqrt + divide.
    d = jnp.clip(1.0 + dots * jax.lax.rsqrt(jnp.maximum(n1sq * n2sq, 1e-16)),
                 0.0, 1.0)
    score = score * d

    # Straight-through gumbel/argmax (ties -> first index, matching torch.max).
    col = jax.lax.broadcasted_iota(jnp.int32, (m, k), 1)
    mx = jnp.max(score, axis=-1, keepdims=True)
    sel = jnp.min(jnp.where(score == mx, col, jnp.int32(k)),
                  axis=-1, keepdims=True)                             # (M, 1)
    onehot = (col == sel).astype(jnp.float32)                         # (M, k)
    new_idx = jnp.sum(pick_mk * onehot, axis=-1, keepdims=True)       # (M, 1)

    # Gather the selected point's slab row: its features are this step's
    # output and its adjacency columns drive the next step.
    g_new = gather(new_idx)                                           # (M, CS)
    cur_g[...] = g_new
    out_ref[0, pl.ds(step, 1)] = g_new[:, :c].astype(out_ref.dtype)[None]


def walk(start_f, slab, params, *, k, curve_num, curve_length, channels):
    bn, n, cs = slab.shape
    m, c = curve_num, channels
    kern = functools.partial(_walk_kernel, npts=n, nchan=c, ncur=m, knbr=k)
    return pl.pallas_call(
        kern,
        grid=(bn, curve_length),
        in_specs=[
            pl.BlockSpec((1, m, 1), lambda b, s: (b, 0, 0)),    # starting indices
            pl.BlockSpec((1, n, cs), lambda b, s: (b, 0, 0)),   # bf16 slab (VMEM-resident per batch)
            pl.BlockSpec((1, c), lambda b, s: (0, 0)),          # momentum weight diff (cur)
            pl.BlockSpec((1, c), lambda b, s: (0, 0)),          # momentum weight diff (pre)
            pl.BlockSpec((1, c), lambda b, s: (0, 0)),          # agent weights, pre half
            pl.BlockSpec((2 * m, m), lambda b, s: (0, 0)),      # stacked scramble S = [S0; S1]
            pl.BlockSpec((2 * m, 1), lambda b, s: (0, 0)),      # stacked scramble t = [t0; t1]
            pl.BlockSpec(memory_space=pltpu.MemorySpace.SMEM),  # folded biases (1, 2)
        ],
        # Output block resident across the whole step axis: one writeback per
        # batch element instead of one small DMA per step.
        out_specs=pl.BlockSpec((1, curve_length, m, c), lambda b, s: (b, 0, 0, 0)),
        out_shape=jax.ShapeDtypeStruct((bn, curve_length, m, c), jnp.float32),
        scratch_shapes=[
            pltpu.VMEM((m, cs), jnp.float32),   # gathered row of current point
            pltpu.VMEM((m, c), jnp.float32),    # pre_feature (momentum state)
        ],
        compiler_params=pltpu.CompilerParams(
            dimension_semantics=("parallel", "arbitrary"),
            vmem_limit_bytes=_vmem_limit()),
    )(start_f, slab, params["dwc"], params["dwp"], params["wpr"],
      params["s"], params["t"], params["bias"])


# ---------------------------------------------------------------------------
# CurveGrouping.forward
# ---------------------------------------------------------------------------
def curve_grouping_forward(x, xyz, idx, params, *, k, curve_num, curve_length):
    del xyz  # the reference builds xyz.transpose(1,2).contiguous but never uses it
    bn, c, n = x.shape

    x_att, x_nc, xw = attention_gate(x, params["w2"])
    start_idx = jax.lax.top_k(x_att[:, 0, :], curve_num)[1]           # (bn, M)
    start_f = start_idx.astype(jnp.float32)[..., None]                # (bn, M, 1)

    # Fold the adjacency (hi/lo, each < 256 so bf16-exact) and the per-point
    # agent pick score into the feature slab: every in-kernel gather is one
    # lane-dense matmul against this single VMEM-resident array.
    adj_hi = (idx // 256).astype(jnp.bfloat16)                        # (bn, N, k)
    adj_lo = (idx % 256).astype(jnp.bfloat16)                         # (bn, N, k)
    score_col = jnp.transpose(xw, (0, 2, 1)).astype(jnp.bfloat16)     # (bn, N, 1)
    slab = jnp.concatenate([x_nc, adj_hi, adj_lo, score_col], axis=-1)

    curves_lmc = walk(start_f, slab, params, k=k, curve_num=curve_num,
                      curve_length=curve_length, channels=c)
    return jnp.transpose(curves_lmc, (0, 3, 2, 1))                    # (bn, C, M, L)


# ---------------------------------------------------------------------------
# Parameters (PyTorch default conv init shapes, BN folded in eval mode)
# ---------------------------------------------------------------------------
def _momentum_scramble_mats(m):
    """Constant matrices reproducing PyTorch's (bn,2,M).view(bn,1,M,2) quirk.

    With p = softmax-channel-0 weight per curve and flat = [p, 1-p]:
        w_cur[i] = flat[2i],  w_pre[i] = flat[2i+1]
    expressed as  w = S @ p + t  with S entries in {-1, 0, 1}; S0/S1 are
    stacked into one (2M, M) matrix so the scramble is a single matmul.
    """
    r = jnp.arange(m)

    def build(flat_idx):
        in_first = flat_idx < m
        cols = jnp.where(in_first, flat_idx, flat_idx - m)
        sgn = jnp.where(in_first, 1.0, -1.0).astype(jnp.float32)
        s = jnp.zeros((m, m), jnp.float32).at[r, cols].set(sgn)
        t = jnp.where(in_first, 0.0, 1.0).astype(jnp.float32)[:, None]
        return s, t

    s0, t0 = build(2 * r)
    s1, t1 = build(2 * r + 1)
    return (jnp.concatenate([s0, s1], axis=0),
            jnp.concatenate([t0, t1], axis=0))


def init_params(key, in_channel, curve_num):
    c = in_channel
    k1, k2, k3 = jax.random.split(key, 3)
    bn_scale = 1.0 / jnp.sqrt(1.0 + 1e-5)   # eval-mode BN: mean=0, var=1

    # att: Conv1d(C, 1, 1, bias=False)
    b_att = 1.0 / (c ** 0.5)
    w_att = jax.random.uniform(k1, (c,), jnp.float32, -b_att, b_att)

    # agent_mlp: Conv2d(2C, 1, 1, bias=False) + BN2d(1) (folded)
    b2 = 1.0 / ((2 * c) ** 0.5)
    wa = jax.random.uniform(k2, (2 * c,), jnp.float32, -b2, b2) * bn_scale
    w2 = jnp.stack([w_att, wa[:c]], axis=0)         # (2, C): [att row ; pick row]
    wpr = wa[c:].reshape(1, c)

    # momentum_mlp: Conv1d(2C, 2, 1, bias=False) + BN1d(2) (folded).  Only the
    # channel difference is needed since softmax(2) == sigmoid(diff).
    wm = jax.random.uniform(k3, (2, 2 * c), jnp.float32, -b2, b2) * bn_scale
    dwc = (wm[0, :c] - wm[1, :c]).reshape(1, c)
    dwp = (wm[0, c:] - wm[1, c:]).reshape(1, c)

    s, t = _momentum_scramble_mats(curve_num)
    # [agent-mlp folded bias, momentum score-difference folded bias] -> SMEM
    bias = jnp.zeros((1, 2), jnp.float32)

    return dict(w2=w2, wpr=wpr, dwc=dwc, dwp=dwp, s=s, t=t, bias=bias)


if __name__ == "__main__":
    in_channel, k, curve_num, curve_length = 8, 4, 8, 4
    bn, n_points = 2, 32

    key = jax.random.PRNGKey(0)
    kx, kxyz, kidx, kp = jax.random.split(key, 4)
    x = jax.random.normal(kx, (bn, in_channel, n_points), jnp.float32)
    xyz = jax.random.normal(kxyz, (bn, 3, n_points), jnp.float32)
    idx = jax.random.randint(kidx, (bn, n_points, k), 0, n_points, jnp.int32)
    params = init_params(kp, in_channel, curve_num)

    curves = curve_grouping_forward(x, xyz, idx, params,
                                    k=k, curve_num=curve_num,
                                    curve_length=curve_length)
    curves = jax.block_until_ready(curves)
    assert curves.shape == (bn, in_channel, curve_num, curve_length), curves.shape
    assert bool(jnp.all(jnp.isfinite(curves)))
    print("KERNEL_OK")
</pallas_src>

<mosaic_0001>
module attributes {stable_mosaic.version = 11 : i64} {
  func.func @_att_kernel(%arg0: i32, %arg1: i32, %arg2: memref<1x8x32xf32, #tpu.memory_space<vmem>>, %arg3: memref<2x8xf32, #tpu.memory_space<vmem>>, %arg4: memref<1x1x32xf32, #tpu.memory_space<vmem>>, %arg5: memref<1x32x8xbf16, #tpu.memory_space<vmem>>, %arg6: memref<1x1x32xf32, #tpu.memory_space<vmem>>) attributes {dimension_semantics = [#tpu.dimension_semantics<parallel>, #tpu.dimension_semantics<parallel>], iteration_bounds = array<i64: 2, 1>, scalar_prefetch = 0 : i64, scratch_operands = 0 : i64, tpu.core_type = #tpu.core_type<tc>, window_params = [{transform_indices = @transform_0, window_bounds = array<i64: 1, 8, 32>}, {pipeline_mode = #tpu.pipeline_mode<synchronous>, transform_indices = @transform_1, window_bounds = array<i64: 2, 8>}, {transform_indices = @transform_2, window_bounds = array<i64: 1, 1, 32>}, {transform_indices = @transform_3, window_bounds = array<i64: 1, 32, 8>}, {transform_indices = @transform_4, window_bounds = array<i64: 1, 1, 32>}]} {
    %c0 = arith.constant 0 : index
    %c0_0 = arith.constant 0 : index
    %c0_1 = arith.constant 0 : index
    %0 = vector.load %arg2[%c0, %c0_0, %c0_1] : memref<1x8x32xf32, #tpu.memory_space<vmem>>, vector<1x8x32xf32>
    %1 = vector.shape_cast %0 : vector<1x8x32xf32> to vector<8x32xf32>
    %c0_2 = arith.constant 0 : index
    %c0_3 = arith.constant 0 : index
    %2 = vector.load %arg3[%c0_2, %c0_3] : memref<2x8xf32, #tpu.memory_space<vmem>>, vector<2x8xf32>
    %cst = arith.constant dense<0.000000e+00> : vector<2x32xf32>
    %3 = tpu.matmul %2, %1, %cst {dimension_numbers = #tpu.dot_dimension_numbers<[1], [0], [0], [1], [0, 0, 1, 1], [], []>} : vector<2x8xf32>, vector<8x32xf32>, vector<2x32xf32> -> vector<2x32xf32>
    %4 = vector.extract_strided_slice %3 {offsets = [0, 0], sizes = [1, 32], strides = [1, 1]} : vector<2x32xf32> to vector<1x32xf32>
    %5 = arith.negf %4 : vector<1x32xf32>
    %6 = math.exp %5 : vector<1x32xf32>
    %cst_4 = arith.constant 1.000000e+00 : f32
    %7 = vector.broadcast %cst_4 : f32 to vector<1x32xf32>
    %8 = arith.addf %7, %6 : vector<1x32xf32>
    %9 = arith.divf %7, %8 : vector<1x32xf32>
    %10 = vector.broadcast %9 : vector<1x32xf32> to vector<8x32xf32>
    %11 = arith.mulf %1, %10 : vector<8x32xf32>
    %c0_5 = arith.constant 0 : index
    %c0_6 = arith.constant 0 : index
    %c0_7 = arith.constant 0 : index
    %12 = vector.load %arg4[%c0_5, %c0_6, %c0_7] : memref<1x1x32xf32, #tpu.memory_space<vmem>>, vector<1x1x32xf32>
    %13 = vector.shape_cast %12 : vector<1x1x32xf32> to vector<1x32xf32>
    %14 = vector.shape_cast %9 : vector<1x32xf32> to vector<1x1x32xf32>
    tpu.vector_store %arg4[%c0_5, %c0_6, %c0_7], %14 {strides = array<i32>} : memref<1x1x32xf32, #tpu.memory_space<vmem>>, vector<1x1x32xf32>,
    %15 = vector.extract_strided_slice %3 {offsets = [1, 0], sizes = [1, 32], strides = [1, 1]} : vector<2x32xf32> to vector<1x32xf32>
    %16 = arith.mulf %15, %9 : vector<1x32xf32>
    %c0_8 = arith.constant 0 : index
    %c0_9 = arith.constant 0 : index
    %c0_10 = arith.constant 0 : index
    %17 = vector.load %arg6[%c0_8, %c0_9, %c0_10] : memref<1x1x32xf32, #tpu.memory_space<vmem>>, vector<1x1x32xf32>
    %18 = vector.shape_cast %17 : vector<1x1x32xf32> to vector<1x32xf32>
    %19 = vector.shape_cast %16 : vector<1x32xf32> to vector<1x1x32xf32>
    tpu.vector_store %arg6[%c0_8, %c0_9, %c0_10], %19 {strides = array<i32>} : memref<1x1x32xf32, #tpu.memory_space<vmem>>, vector<1x1x32xf32>,
    %20 = tpu.transpose %11, [1, 0] : vector<8x32xf32> -> vector<32x8xf32>
    %21 = arith.truncf %20 : vector<32x8xf32> to vector<32x8xbf16>
    %c0_11 = arith.constant 0 : index
    %c0_12 = arith.constant 0 : index
    %c0_13 = arith.constant 0 : index
    %22 = vector.load %arg5[%c0_11, %c0_12, %c0_13] : memref<1x32x8xbf16, #tpu.memory_space<vmem>>, vector<1x32x8xbf16>
    %23 = vector.shape_cast %22 : vector<1x32x8xbf16> to vector<32x8xbf16>
    %24 = vector.shape_cast %21 : vector<32x8xbf16> to vector<1x32x8xbf16>
    tpu.vector_store %arg5[%c0_11, %c0_12, %c0_13], %24 {strides = array<i32>} : memref<1x32x8xbf16, #tpu.memory_space<vmem>>, vector<1x32x8xbf16>,
    return
  }
  func.func @transform_0(%arg0: i32, %arg1: i32) -> (i32, i32, i32) {
    %c0_i32 = arith.constant 0 : i32
    %c0_i32_0 = arith.constant 0 : i32
    return %arg0, %c0_i32, %arg1 : i32, i32, i32
  }
  func.func @transform_1(%arg0: i32, %arg1: i32) -> (i32, i32) {
    %c0_i32 = arith.constant 0 : i32
    %c0_i32_0 = arith.constant 0 : i32
    %c0_i32_1 = arith.constant 0 : i32
    return %c0_i32, %c0_i32_0 : i32, i32
  }
  func.func @transform_2(%arg0: i32, %arg1: i32) -> (i32, i32, i32) {
    %c0_i32 = arith.constant 0 : i32
    %c0_i32_0 = arith.constant 0 : i32
    return %arg0, %c0_i32, %arg1 : i32, i32, i32
  }
  func.func @transform_3(%arg0: i32, %arg1: i32) -> (i32, i32, i32) {
    %c0_i32 = arith.constant 0 : i32
    %c0_i32_0 = arith.constant 0 : i32
    return %arg0, %arg1, %c0_i32 : i32, i32, i32
  }
  func.func @transform_4(%arg0: i32, %arg1: i32) -> (i32, i32, i32) {
    %c0_i32 = arith.constant 0 : i32
    %c0_i32_0 = arith.constant 0 : i32
    return %arg0, %c0_i32, %arg1 : i32, i32, i32
  }
}

</mosaic_0001>

<llo_original>
// kernel: tpu_custom_call.1
$region0: #{tpu_custom_call.1}
  #allocation0 [shape = 'u32[]', space=smem, size = 0x4, offset = 0x4, fixed_abs, tag = 'smem constant byte address 0x4 - core index']
  #allocation1 [shape = 'u32[144,128]{1,0:T(1,128)}', space=vmem, size = 0x12000, scoped, tag = 'internal scratch']
  %s0 = inlined_call_operand.hbm [shape: f32[2,8,32], index: 0, kind: input, shape index: {}]
  %s1 = inlined_call_operand.hbm [shape: f32[2,8], index: 1, kind: input, shape index: {}]
  %s2 = inlined_call_operand.hbm [shape: f32[2,1,32], index: 2, kind: output, shape index: {0}]
  %s3 = inlined_call_operand.vmem [shape: bf16[2,32,8], index: 3, kind: output, shape index: {1}]
  %s4 = inlined_call_operand.hbm [shape: f32[2,1,32], index: 4, kind: output, shape index: {2}]
  %5 = xla_tuple %s2, %s3, %s4
  %s6 = sld [smem:[#allocation0]]
  $region65: #{tpu_custom_call.1} parent=0
    _
  %s8 = ssub.s32 1, %s6
  %s9 = scalar_select 0, %s8, %s6
  $region1: #{tpu_custom_call.1} parent=0
    #allocation2 [shape = 'u8[8192]{0}', space=vmem, size = 0x2000, scoped, tag = 'input window, operand 0']
    #allocation3 [shape = 's32[2]{0}', space=sflag, size = 0x8, scoped, tag = 'scoped memory for tpu_custom_call.1']
    #allocation4 [shape = 's32[2]{0}', space=sflag, size = 0x8, scoped, tag = 'scoped memory for tpu_custom_call.1']
    #allocation5 [shape = 'u8[1024]{0}', space=vmem, size = 0x400, scoped, tag = 'input window, operand 1, single buffered']
    #allocation6 [shape = 's32[1]{0}', space=sflag, size = 0x4, scoped, tag = 'scoped memory for tpu_custom_call.1']
    #allocation7 [shape = 'u8[1024]{0}', space=vmem, size = 0x400, scoped, tag = 'output window, operand 0']
    #allocation8 [shape = 'u8[1024]{0}', space=vmem, size = 0x400, scoped, tag = 'output window, operand 2']
    #allocation9 [shape = 's32[2]{0}', space=sflag, size = 0x8, scoped, tag = 'scoped memory for tpu_custom_call.1']
    %10 = vsyncpa [#allocation3], 0
    %s11 = scalar_lea.sflag [#allocation3], 1
    %12 = vsyncpa %s11, 0
    %13 = vsyncpa [#allocation6], 0
    %14 = vsyncpa [#allocation4], 0
    %s15 = scalar_lea.sflag [#allocation4], 1
    %16 = vsyncpa %s15, 0
    %17 = vsyncpa [#allocation9], 0
    %s18 = scalar_lea.sflag [#allocation9], 1
    %19 = vsyncpa %s18, 0
    loop: start=0, step=1, limit=4
    $region2: #{tpu_custom_call.1} parent=1 // loop_pre_header
      _
    $region3: #{tpu_custom_call.1} parent=1 // loop_header
      %s21 = sphi 0, %s25
      %p22 = scmp.ge.s32.totalorder %s21, 4
      %s28 = sphi 0, %s40
      %s29 = sphi 0, %s36
      %s30 = sphi 0, %s28
      %s31 = sphi 0, %s29
      %s32 = sphi 0, %s30
      %s33 = sphi 0, %s31
      %s45 = sphi 0, %s47
      %s48 = sphi 0, %s45
      %s49 = sphi 0, %s48
      %s65 = sphi 0, %s49
      %s69 = sphi 0, %s69
      %s71 = sphi 0, %s69
      %s72 = sphi 0, %s71
      %s86 = sphi 0, %s72
      %s94 = sphi 0, %s96
      %s97 = sphi 0, %s94
      %s98 = sphi 0, %s97
      %s114 = sphi 0, %s98
      %s122 = sphi 0, %s124
      %s125 = sphi 0, %s122
      %s126 = sphi 0, %s125
      %s142 = sphi 0, %s126
      %s150 = sphi 0, %s152
      %s153 = sphi 0, %s150
      %s154 = sphi 0, %s153
      %s170 = sphi 0, %s154
    $region4: #{tpu_custom_call.1} parent=1 // loop_header_branch
      %24 = sbr.rel (%p22) target = $region8
    $region5: #{tpu_custom_call.1} parent=1 // loop_body
      %s26 = ssub.s32 %s21, 1
      %s27 = ssub.s32 %s21, 2
      %s34 = sadd.s32 1, %s29
      %p35 = scmp.ge.s32.totalorder %s34, 1
      %s36 = scalar_select %p35, 0, %s34
      %s37 = sadd.s32 1, %s28
      %s38 = scalar_select %p35, %s37, %s28
      %p39 = scmp.ge.s32.totalorder %s38, 2
      %s40 = scalar_select %p39, 0, %s38
      %s41 = ssub.s32 %s28, %s40
      %s42 = ssub.s32 %s29, %s36
      %s43 = sor.u32 %s41, %s42
      %p44 = scmp.eq.s32.totalorder %s43, 0
      %s46 = sadd.s32 %s45, 1
      %s47 = scalar_select %p44, %s45, %s46
      %p50 = pneg %p44
      %p51 = scmp.eq.s32.totalorder %s21, 1
      %p52 = por %p50, %p51
      %p53 = scmp.ne.s32.totalorder %s45, %s48
      %p54 = scmp.eq.s32.totalorder %s21, 0
      %p55 = por %p53, %p54
      %p56 = scmp.ne.s32.totalorder %s45, %s48
      %p57 = scmp.eq.s32.totalorder %s26, 1
      %p58 = por %p56, %p57
      %p59 = scmp.ne.s32.totalorder %s48, %s49
      %p60 = scmp.eq.s32.totalorder %s26, 0
      %p61 = por %p59, %p60
      %p62 = scmp.ne.s32.totalorder %s48, %s49
      %p63 = scmp.eq.s32.totalorder %s27, 1
      %p64 = por %p62, %p63
      %p66 = scmp.ne.s32.totalorder %s49, %s65
      %p67 = scmp.eq.s32.totalorder %s27, 0
      %p68 = por %p66, %p67
      %s70 = sadd.s32 %s69, 1
      %p73 = scmp.eq.s32.totalorder %s21, 1
      %p74 = scmp.ne.s32.totalorder %s69, %s71
      %p75 = scmp.eq.s32.totalorder %s21, 0
      %p76 = por %p74, %p75
      %p77 = scmp.ne.s32.totalorder %s69, %s71
      %p78 = scmp.eq.s32.totalorder %s26, 1
      %p79 = por %p77, %p78
      %p80 = scmp.ne.s32.totalorder %s71, %s72
      %p81 = scmp.eq.s32.totalorder %s26, 0
      %p82 = por %p80, %p81
      %p83 = scmp.ne.s32.totalorder %s71, %s72
      %p84 = scmp.eq.s32.totalorder %s27, 1
      %p85 = por %p83, %p84
      %p87 = scmp.ne.s32.totalorder %s72, %s86
      %p88 = scmp.eq.s32.totalorder %s27, 0
      %p89 = por %p87, %p88
      %s90 = ssub.s32 %s28, %s40
      %s91 = ssub.s32 %s29, %s36
      %s92 = sor.u32 %s90, %s91
      %p93 = scmp.eq.s32.totalorder %s92, 0
      %s95 = sadd.s32 %s94, 1
      %s96 = scalar_select %p93, %s94, %s95
      %p99 = pneg %p93
      %p100 = scmp.eq.s32.totalorder %s21, 1
      %p101 = por %p99, %p100
      %p102 = scmp.ne.s32.totalorder %s94, %s97
      %p103 = scmp.eq.s32.totalorder %s21, 0
      %p104 = por %p102, %p103
      %p105 = scmp.ne.s32.totalorder %s94, %s97
      %p106 = scmp.eq.s32.totalorder %s26, 1
      %p107 = por %p105, %p106
      %p108 = scmp.ne.s32.totalorder %s97, %s98
      %p109 = scmp.eq.s32.totalorder %s26, 0
      %p110 = por %p108, %p109
      %p111 = scmp.ne.s32.totalorder %s97, %s98
      %p112 = scmp.eq.s32.totalorder %s27, 1
      %p113 = por %p111, %p112
      %p115 = scmp.ne.s32.totalorder %s98, %s114
      %p116 = scmp.eq.s32.totalorder %s27, 0
      %p117 = por %p115, %p116
      %s118 = ssub.s32 %s28, %s40
      %s119 = ssub.s32 %s29, %s36
      %s120 = sor.u32 %s118, %s119
      %p121 = scmp.eq.s32.totalorder %s120, 0
      %s123 = sadd.s32 %s122, 1
      %s124 = scalar_select %p121, %s122, %s123
      %p127 = pneg %p121
      %p128 = scmp.eq.s32.totalorder %s21, 1
      %p129 = por %p127, %p128
      %p130 = scmp.ne.s32.totalorder %s122, %s125
      %p131 = scmp.eq.s32.totalorder %s21, 0
      %p132 = por %p130, %p131
      %p133 = scmp.ne.s32.totalorder %s122, %s125
      %p134 = scmp.eq.s32.totalorder %s26, 1
      %p135 = por %p133, %p134
      %p136 = scmp.ne.s32.totalorder %s125, %s126
      %p137 = scmp.eq.s32.totalorder %s26, 0
      %p138 = por %p136, %p137
      %p139 = scmp.ne.s32.totalorder %s125, %s126
      %p140 = scmp.eq.s32.totalorder %s27, 1
      %p141 = por %p139, %p140
      %p143 = scmp.ne.s32.totalorder %s126, %s142
      %p144 = scmp.eq.s32.totalorder %s27, 0
      %p145 = por %p143, %p144
      %s146 = ssub.s32 %s28, %s40
      %s147 = ssub.s32 %s29, %s36
      %s148 = sor.u32 %s146, %s147
      %p149 = scmp.eq.s32.totalorder %s148, 0
      %s151 = sadd.s32 %s150, 1
      %s152 = scalar_select %p149, %s150, %s151
      %p155 = pneg %p149
      %p156 = scmp.eq.s32.totalorder %s21, 1
      %p157 = por %p155, %p156
      %p158 = scmp.ne.s32.totalorder %s150, %s153
      %p159 = scmp.eq.s32.totalorder %s21, 0
      %p160 = por %p158, %p159
      %p161 = scmp.ne.s32.totalorder %s150, %s153
      %p162 = scmp.eq.s32.totalorder %s26, 1
      %p163 = por %p161, %p162
      %p164 = scmp.ne.s32.totalorder %s153, %s154
      %p165 = scmp.eq.s32.totalorder %s26, 0
      %p166 = por %p164, %p165
      %p167 = scmp.ne.s32.totalorder %s153, %s154
      %p168 = scmp.eq.s32.totalorder %s27, 1
      %p169 = por %p167, %p168
      %p171 = scmp.ne.s32.totalorder %s154, %s170
      %p172 = scmp.eq.s32.totalorder %s27, 0
      %p173 = por %p171, %p172
      %p174 = scmp.le.s32.totalorder 1, %s21
      %p175 = scmp.lt.s32.totalorder %s21, 3
      %p176 = pnand %p174, %p175
      %p177 = pneg %p176
      // Predicated region
      $region9: #{tpu_custom_call.1} parent=5 // pred_check
        _
      $region10: #{tpu_custom_call.1} parent=5 // pred_check_branch
        %179 = sbr.rel (%p176) target = $region12
      $region11: #{tpu_custom_call.1} parent=5 // pred_region
        %s180 = ssub.s32 %s21, 1
        // Predicated region
        $region13: #{tpu_custom_call.1} parent=11 // pred_check
          %p181 = pneg %p82
        $region14: #{tpu_custom_call.1} parent=11 // pred_check_branch
          %183 = sbr.rel (%p181) target = $region16
        $region15: #{tpu_custom_call.1} parent=11 // pred_region
          %s185 = ssub.s32 32, 32
          %186 = vsyncadd [#allocation6], %s185
          %s188 = sshll.u32 [#allocation5], 4
          %s189 = int_to_ptr.vmem [resolvable:$true] %s188
          %191 = dma.hbm_to_vmem [thread:$0]  %s1, 32, %s189, [#allocation6]
        $region16: #{tpu_custom_call.1} parent=11 // pred_fallthru
          _
      $region12: #{tpu_custom_call.1} parent=5 // pred_fallthru
        _
      %p192 = scmp.lt.s32.totalorder %s21, 2
      // Predicated region
      $region17: #{tpu_custom_call.1} parent=5 // pred_check
        %p193 = pneg %p192
      $region18: #{tpu_custom_call.1} parent=5 // pred_check_branch
        %195 = sbr.rel (%p193) target = $region20
      $region19: #{tpu_custom_call.1} parent=5 // pred_region
        // Predicated region
        $region21: #{tpu_custom_call.1} parent=19 // pred_check
          %p196 = pneg %p55
        $region22: #{tpu_custom_call.1} parent=19 // pred_check_branch
          %198 = sbr.rel (%p196) target = $region24
        $region23: #{tpu_custom_call.1} parent=19 // pred_region
          %s199 = sand.u32 %s45, 1
          %s200 = scalar_lea.sflag [#allocation3], %s199
          %s201 = sand.u32 %s45, 1
          %s202 = smul.addr %s201, 8
          %s203 = scalar_lea.vmem [#allocation2], %s202
          %s205 = ssub.s32 128, 128
          %206 = vsyncadd %s200, %s205
          %s207 = sadd.s32 %s29, %s28
          %s208 = smul.addr %s207, 128
          %s209 = scalar_lea.hbm %s0, %s208
          %s211 = sshll.u32 %s203, 4
          %s212 = int_to_ptr.vmem [resolvable:$true] %s211
          %214 = dma.hbm_to_vmem [thread:$0]  %s209, 128, %s212, %s200
        $region24: #{tpu_custom_call.1} parent=19 // pred_fallthru
          _
      $region20: #{tpu_custom_call.1} parent=5 // pred_fallthru
        _
      %p215 = scmp.le.s32.totalorder 1, %s21
      %p216 = scmp.lt.s32.totalorder %s21, 3
      %p217 = pnand %p215, %p216
      %p218 = pneg %p217
      // Predicated region
      $region25: #{tpu_custom_call.1} parent=5 // pred_check
        _
      $region26: #{tpu_custom_call.1} parent=5 // pred_check_branch
        %220 = sbr.rel (%p217) target = $region28
      $region27: #{tpu_custom_call.1} parent=5 // pred_region
        %s221 = ssub.s32 %s21, 1
        %s222 = sand.u32 %s48, 1
        %s223 = scalar_lea.sflag [#allocation3], %s222
        %s224 = sand.u32 %s48, 1
        %s225 = smul.addr %s224, 8
        %s226 = scalar_lea.vmem [#allocation2], %s225
        // Predicated region
        $region29: #{tpu_custom_call.1} parent=27 // pred_check
          %p227 = pneg %p61
        $region30: #{tpu_custom_call.1} parent=27 // pred_check_branch
          %229 = sbr.rel (%p227) target = $region32
        $region31: #{tpu_custom_call.1} parent=27 // pred_region
          %230 = dma.done %s223, 128
        $region32: #{tpu_custom_call.1} parent=27 // pred_fallthru
          _
        // Predicated region
        $region33: #{tpu_custom_call.1} parent=27 // pred_check
          %p231 = pneg %p82
        $region34: #{tpu_custom_call.1} parent=27 // pred_check_branch
          %233 = sbr.rel (%p231) target = $region36
        $region35: #{tpu_custom_call.1} parent=27 // pred_region
          %234 = dma.done [#allocation6], 32
        $region36: #{tpu_custom_call.1} parent=27 // pred_fallthru
          _
        %s235 = sand.u32 %s48, 1
        %s236 = scalar_lea.sflag [#allocation3], %s235
        %s237 = sand.u32 %s48, 1
        %s238 = smul.addr %s237, 8
        %s239 = scalar_lea.vmem [#allocation2], %s238
        %p240 = pneg %p61
        %p241 = pneg %p58
        %p242 = pneg %p82
        %p243 = pneg %p79
        %p244 = pneg %p110
        %p245 = pneg %p107
        %s246 = sand.u32 %s97, 1
        %s247 = scalar_lea.sflag [#allocation4], %s246
        %s248 = sand.u32 %s97, 1
        %s249 = scalar_lea.vmem [#allocation7], %s248
        %p250 = pneg %p138
        %p251 = pneg %p135
        %s252 = smul.u32 4, %s31
        %p253 = scmp.lt.s32.totalorder %s30, 1
        %s254 = scalar_select %p253, %s30, 1
        %p255 = scmp.lt.s32.totalorder %s252, 3
        %s256 = scalar_select %p255, %s252, 3
        %s257 = smul.addr %s254, 4
        %s258 = sadd.s32 %s256, %s257
        %s259 = smul.addr %s258, 4
        %s260 = scalar_lea.vmem %s3, %s259
        %p261 = pneg %p166
        %p262 = pneg %p163
        %s263 = sand.u32 %s153, 1
        %s264 = scalar_lea.sflag [#allocation9], %s263
        %s265 = sand.u32 %s153, 1
        %s266 = scalar_lea.vmem [#allocation8], %s265
        %s267 = smul.u32 4, %s31
        %p268 = scmp.lt.s32.totalorder %s30, 1
        %s269 = scalar_select %p268, %s30, 1
        %p270 = scmp.lt.s32.totalorder %s267, 3
        %s271 = scalar_select %p270, %s267, 3
        %s272 = smul.addr %s269, 4
        %s273 = sadd.s32 %s271, %s272
        %s274 = smul.addr %s273, 4
        %s275 = scalar_lea.vmem %s3, %s274
        %s276 = smul.u32 4, %s31
        %v277 = vld [vmem:[%s226] sm:$0xff]
        %v278 = vld [vmem:[#allocation5] sm:$0x3]
        %vm279 = vcmask 64512
        %v281 = vsel %vm279, %v278, 0
        %283 = vmatprep.subr.mxu0 0.0
        %284 = vmatpush1.msra.mxu0 0.0
        %285 = vmatprep.subr.mxu0 0.0
        %286 = vmatpush1.msra.mxu0 0.0
        %287 = vmatprep.subr.mxu0 0.0
        %288 = vmatpush1.msra.mxu0 0.0
        %289 = vmatprep.subr.mxu0 0.0
        %290 = vmatpush1.msra.mxu0 0.0
        %291 = vmatprep.subr.mxu0 0.0
        %292 = vmatpush1.msra.mxu0 0.0
        %293 = vmatprep.subr.mxu0 0.0
        %294 = vmatpush1.msra.mxu0 0.0
        %295 = vmatprep.subr.mxu0 0.0
        %296 = vmatpush1.msra.mxu0 0.0
        %297 = vmatprep.subr.mxu0 0.0
        %298 = vmatpush1.msra.mxu0 0.0
        %299 = vmatprep.subr.mxu0 0.0
        %300 = vmatpush1.msra.mxu0 0.0
        %301 = vmatprep.subr.mxu0 0.0
        %302 = vmatpush1.msra.mxu0 0.0
        %303 = vmatprep.subr.mxu0 0.0
        %304 = vmatpush1.msra.mxu0 0.0
        %305 = vmatprep.subr.mxu0 0.0
        %306 = vmatpush1.msra.mxu0 0.0
        %307 = vmatprep.subr.mxu0 0.0
        %308 = vmatpush1.msra.mxu0 0.0
        %309 = vmatprep.subr.mxu0 0.0
        %310 = vmatpush1.msra.mxu0 0.0
        %311 = vmatprep.subr.mxu0 0.0
        %312 = vmatpush1.msra.mxu0 0.0
        %313 = vmatprep.subr.mxu0 0.0
        %314 = vmatpush1.msra.mxu0 %v277
        %315 = vmatprep.subr.mxu0 0.0
        %316 = vmatpush2.msra.mxu0 0.0
        %317 = vmatprep.subr.mxu0 0.0
        %318 = vmatpush2.msra.mxu0 0.0
        %319 = vmatprep.subr.mxu0 0.0
        %320 = vmatpush2.msra.mxu0 0.0
        %321 = vmatprep.subr.mxu0 0.0
        %322 = vmatpush2.msra.mxu0 0.0
        %323 = vmatprep.subr.mxu0 0.0
        %324 = vmatpush2.msra.mxu0 0.0
        %325 = vmatprep.subr.mxu0 0.0
        %326 = vmatpush2.msra.mxu0 0.0
        %327 = vmatprep.subr.mxu0 0.0
        %328 = vmatpush2.msra.mxu0 0.0
        %329 = vmatprep.subr.mxu0 0.0
        %330 = vmatpush2.msra.mxu0 0.0
        %331 = vmatprep.subr.mxu0 0.0
        %332 = vmatpush2.msra.mxu0 0.0
        %333 = vmatprep.subr.mxu0 0.0
        %334 = vmatpush2.msra.mxu0 0.0
        %335 = vmatprep.subr.mxu0 0.0
        %336 = vmatpush2.msra.mxu0 0.0
        %337 = vmatprep.subr.mxu0 0.0
        %338 = vmatpush2.msra.mxu0 0.0
        %339 = vmatprep.subr.mxu0 0.0
        %340 = vmatpush2.msra.mxu0 0.0
        %341 = vmatprep.subr.mxu0 0.0
        %342 = vmatpush2.msra.mxu0 0.0
        %343 = vmatprep.subr.mxu0 0.0
        %344 = vmatpush2.msra.mxu0 0.0
        %345 = vmatprep.subr.mxu0 0.0
        %346 = vmatpush2.msra.mxu0 0.0
        %347 = vmatprep.mubr.f32.mxu0 0.0
        %348 = vmatmul.mubr.f32.gmra.mxu0 %v281
        %v349 = vpop.f32.mrf.mxu0
        %v350 = vadd.f32 0.0, %v349
        %v351 = vpop.f32.mrf.mxu0
        %352 = vdwg.mxu0
        %v353 = vxor.u32 %v350, 2147483648
        %v354 = vmul.f32 %v353, 1.442695
        %v355 = vpow.pop %v354
        %v356 = vadd.f32 %v355, 1.0
        %v357 = vrcp.pop %v356
        %v358 = vmul.f32 1.0, %v357
        %v359 = vlaneseq
        %v360 = vshrl.u32 %v359, 7
        %v361 = vsub.s32 0, %v360
        %v362 = vrot.slane %v358, %v361
        %v363 = vmul.f32 %v277, %v362
        %vm364 = vcmask 253952
        %365 = vst.msk [vmem:[%s249] sm:$0x1] %vm364, %v358
        %v367 = vrot.slane %v358, 7
        %v369 = vmul.f32 %v350, %v367
        %vm370 = vcmask 254977
        %371 = vst.msk [vmem:[%s266 - $0x1] sm:$0x2] %vm370, %v369
        %372 = vxpose.xlu0.b32.start [1/16] %v363, 128
        %373 = vxpose.xlu0.b32.cont [2/16] 0.0, 128
        %374 = vxpose.xlu0.b32.cont [3/16] 0.0, 128
        %375 = vxpose.xlu0.b32.cont [4/16] 0.0, 128
        %376 = vxpose.xlu0.b32.cont [5/16] 0.0, 128
        %377 = vxpose.xlu0.b32.cont [6/16] 0.0, 128
        %378 = vxpose.xlu0.b32.cont [7/16] 0.0, 128
        %379 = vxpose.xlu0.b32.cont [8/16] 0.0, 128
        %380 = vxpose.xlu0.b32.cont [9/16] 0.0, 128
        %381 = vxpose.xlu0.b32.cont [10/16] 0.0, 128
        %382 = vxpose.xlu0.b32.cont [11/16] 0.0, 128
        %383 = vxpose.xlu0.b32.cont [12/16] 0.0, 128
        %384 = vxpose.xlu0.b32.cont [13/16] 0.0, 128
        %385 = vxpose.xlu0.b32.cont [14/16] 0.0, 128
        %386 = vxpose.xlu0.b32.cont [15/16] 0.0, 128
        %387 = vxpose.xlu0.b32.end [16/16] 0.0, 128
        %v388 = vpop.trf.xlu0
        %v389 = vpop.trf.xlu0
        %v390 = vpop.trf.xlu0
        %v391 = vpop.trf.xlu0
        %v392 = vpop.trf.xlu0
        %v393 = vpop.trf.xlu0
        %v394 = vpop.trf.xlu0
        %v395 = vpop.trf.xlu0
        %v396 = vpop.trf.xlu0
        %v397 = vpop.trf.xlu0
        %v398 = vpop.trf.xlu0
        %v399 = vpop.trf.xlu0
        %v400 = vpop.trf.xlu0
        %v401 = vpop.trf.xlu0
        %v402 = vpop.trf.xlu0
        %v403 = vpop.trf.xlu0
        %v404 = vpack.c.bf16 %v389, %v388
        %v405 = vpack.c.bf16 %v391, %v390
        %v408 = vunpack.c.l.b16 %v404
        %v409 = vunpack.c.h.b16 %v404
        %v410 = vunpack.c.l.b16 %v405
        %v411 = vunpack.c.h.b16 %v405
        %v412 = vpack.c.b16 %v408, %v408
        %v413 = vpack.c.b16 %v409, %v409
        %v414 = vpack.c.b16 %v410, %v410
        %v415 = vpack.c.b16 %v411, %v411
        %vm420 = vcmask 60416
        %421 = vst.msk [vmem:[%s275] sm:$0xf] %vm420, %v412
        %422 = vst.msk [vmem:[%s275 + $0x4] sm:$0xf] %vm420, %v413
        %423 = vst.msk [vmem:[%s275 + $0x8] sm:$0xf] %vm420, %v414
        %424 = vst.msk [vmem:[%s275 + $0xc] sm:$0xf] %vm420, %v415
        %s425 = sand.u32 %s97, 1
        %s426 = scalar_lea.sflag [#allocation4], %s425
        %s427 = sand.u32 %s97, 1
        %s428 = scalar_lea.vmem [#allocation7], %s427
        %s429 = smul.u32 4, %s31
        %p430 = scmp.lt.s32.totalorder %s30, 1
        %s431 = scalar_select %p430, %s30, 1
        %p432 = scmp.lt.s32.totalorder %s429, 3
        %s433 = scalar_select %p432, %s429, 3
        %s434 = smul.addr %s431, 4
        %s435 = sadd.s32 %s433, %s434
        %s436 = smul.addr %s435, 4
        %s437 = scalar_lea.vmem %s3, %s436
        %s438 = sand.u32 %s153, 1
        %s439 = scalar_lea.sflag [#allocation9], %s438
        %s440 = sand.u32 %s153, 1
        %s441 = scalar_lea.vmem [#allocation8], %s440
        // Predicated region
        $region37: #{tpu_custom_call.1} parent=27 // pred_check
          %p442 = pneg %p107
        $region38: #{tpu_custom_call.1} parent=27 // pred_check_branch
          %444 = sbr.rel (%p442) target = $region40
        $region39: #{tpu_custom_call.1} parent=27 // pred_region
          %s446 = ssub.s32 16, 16
          %447 = vsyncadd %s426, %s446
          %s448 = sadd.s32 %s31, %s30
          %s449 = smul.addr %s448, 16
          %s450 = scalar_lea.hbm %s2, %s449
          %s452 = sshll.u32 %s428, 4
          %s453 = int_to_ptr.vmem [resolvable:$true] %s452
          %455 = dma.vmem_to_hbm [thread:$0]  %s453, 16, %s450, %s426
        $region40: #{tpu_custom_call.1} parent=27 // pred_fallthru
          _
        // Predicated region
        $region41: #{tpu_custom_call.1} parent=27 // pred_check
          %p456 = pneg %p135
        $region42: #{tpu_custom_call.1} parent=27 // pred_check_branch
          %458 = sbr.rel (%p456) target = $region44
        $region43: #{tpu_custom_call.1} parent=27 // pred_region
          %s459 = smul.u32 4, %s31
        $region44: #{tpu_custom_call.1} parent=27 // pred_fallthru
          _
        // Predicated region
        $region45: #{tpu_custom_call.1} parent=27 // pred_check
          %p460 = pneg %p163
        $region46: #{tpu_custom_call.1} parent=27 // pred_check_branch
          %462 = sbr.rel (%p460) target = $region48
        $region47: #{tpu_custom_call.1} parent=27 // pred_region
          %s464 = ssub.s32 16, 16
          %465 = vsyncadd %s439, %s464
          %s466 = sadd.s32 %s31, %s30
          %s467 = smul.addr %s466, 16
          %s468 = scalar_lea.hbm %s4, %s467
          %s470 = sshll.u32 %s441, 4
          %s471 = int_to_ptr.vmem [resolvable:$true] %s470
          %473 = dma.vmem_to_hbm [thread:$0]  %s471, 16, %s468, %s439
        $region48: #{tpu_custom_call.1} parent=27 // pred_fallthru
          _
      $region28: #{tpu_custom_call.1} parent=5 // pred_fallthru
        _
      %p474 = scmp.le.s32.totalorder 2, %s21
      // Predicated region
      $region49: #{tpu_custom_call.1} parent=5 // pred_check
        %p475 = pneg %p474
      $region50: #{tpu_custom_call.1} parent=5 // pred_check_branch
        %477 = sbr.rel (%p475) target = $region52
      $region51: #{tpu_custom_call.1} parent=5 // pred_region
        %s478 = ssub.s32 %s21, 2
        // Predicated region
        $region53: #{tpu_custom_call.1} parent=51 // pred_check
          %p479 = pneg %p113
        $region54: #{tpu_custom_call.1} parent=51 // pred_check_branch
          %481 = sbr.rel (%p479) target = $region56
        $region55: #{tpu_custom_call.1} parent=51 // pred_region
          %s482 = sand.u32 %s98, 1
          %s483 = scalar_lea.sflag [#allocation4], %s482
          %s484 = sand.u32 %s98, 1
          %s485 = scalar_lea.vmem [#allocation7], %s484
          %486 = dma.done %s483, 16
        $region56: #{tpu_custom_call.1} parent=51 // pred_fallthru
          _
        // Predicated region
        $region57: #{tpu_custom_call.1} parent=51 // pred_check
          %p487 = pneg %p141
        $region58: #{tpu_custom_call.1} parent=51 // pred_check_branch
          %489 = sbr.rel (%p487) target = $region60
        $region59: #{tpu_custom_call.1} parent=51 // pred_region
          %s490 = smul.u32 4, %s33
          %p491 = scmp.lt.s32.totalorder %s32, 1
          %s492 = scalar_select %p491, %s32, 1
          %p493 = scmp.lt.s32.totalorder %s490, 3
          %s494 = scalar_select %p493, %s490, 3
          %s495 = smul.addr %s492, 4
          %s496 = sadd.s32 %s494, %s495
          %s497 = smul.addr %s496, 4
          %s498 = scalar_lea.vmem %s3, %s497
        $region60: #{tpu_custom_call.1} parent=51 // pred_fallthru
          _
        // Predicated region
        $region61: #{tpu_custom_call.1} parent=51 // pred_check
          %p499 = pneg %p169
        $region62: #{tpu_custom_call.1} parent=51 // pred_check_branch
          %501 = sbr.rel (%p499) target = $region64
        $region63: #{tpu_custom_call.1} parent=51 // pred_region
          %s502 = sand.u32 %s154, 1
          %s503 = scalar_lea.sflag [#allocation9], %s502
          %s504 = sand.u32 %s154, 1
          %s505 = scalar_lea.vmem [#allocation8], %s504
          %506 = dma.done %s503, 16
        $region64: #{tpu_custom_call.1} parent=51 // pred_fallthru
          _
      $region52: #{tpu_custom_call.1} parent=5 // pred_fallthru
        _
    $region6: #{tpu_custom_call.1} parent=1 // loop_footer
      %s25 = sadd.s32 1, %s21
    $region7: #{tpu_custom_call.1} parent=1 // loop_footer_branch
      %20 = sbr.rel target = $region3
    $region8: #{tpu_custom_call.1} parent=1 // loop_exit
      _
    %507 = vsyncpa [#allocation3], 1
    %s508 = scalar_lea.sflag [#allocation3], 1
    %509 = vsyncpa %s508, 1
    %510 = vsyncpa [#allocation6], 1
    %511 = vsyncpa [#allocation4], 1
    %s512 = scalar_lea.sflag [#allocation4], 1
    %513 = vsyncpa %s512, 1
    %514 = vsyncpa [#allocation9], 1
    %s515 = scalar_lea.sflag [#allocation9], 1
    %516 = vsyncpa %s515, 1

</llo_original>
